<compile_context>
chip_gen: v5e
topology: v5e:2x2
jax: 0.10.0
libtpu: 0.0.40
codegen_flags: <defaults>
</compile_context>

<pallas_src>
import functools

import jax
import jax.numpy as jnp
from jax import lax
from jax.experimental import pallas as pl
from jax.experimental.pallas import tpu as pltpu


def _wmse_kernel(pred_ref, targ_ref, out_ref, *, n_total: float):
    # Upcast in-kernel: DMA narrow, compute wide (required on v5e; free on f32).
    t = targ_ref[...].astype(jnp.float32)
    p = pred_ref[...].astype(jnp.float32)

    inv_n = jnp.float32(1.0 / n_total)

    # Pass 1: mean of targets.
    mean = jnp.sum(t) * inv_n

    # Pass 2: unbiased variance (torch.std default: correction=1).
    centered = t - mean
    var = jnp.sum(centered * centered) * jnp.float32(1.0 / (n_total - 1.0))

    # Single EUP op instead of sqrt followed by a full-precision divide; the
    # divide-by-std is hoisted to one scalar so per-element work is a VPU mul,
    # keeping the EUP slot otherwise free for exp.
    neg_inv_std = -lax.rsqrt(var)

    # Pass 3: weighted squared error -> scalar loss, stored straight to SMEM.
    weights = jnp.exp(jnp.abs(centered) * neg_inv_std)
    diff = p - t
    out_ref[0, 0] = jnp.sum(weights * diff * diff) * inv_n


def weighted_mse_loss(predictions, targets, *, lanes=128):
    assert predictions.shape == targets.shape
    n_total = predictions.size
    # TODO(synk): the PyTorch module accepts arbitrary shapes; a padded variant
    # must mask padded elements out of the mean/std/loss reductions.
    assert n_total % lanes == 0, "total element count must be a multiple of 128"
    rows = n_total // lanes
    assert rows % 8 == 0, "rows must be a multiple of 8 (sublane tiling)"

    # Contiguous row-major reshape to a lane-dense (rows, 128) slab (no data
    # movement). No wrapper-side dtype cast — the kernel upcasts, so narrow
    # dtypes are DMA'd at their native width.
    pred2d = predictions.reshape(rows, lanes)
    targ2d = targets.reshape(rows, lanes)

    kernel = functools.partial(_wmse_kernel, n_total=float(n_total))

    # Gridless single invocation: both full arrays (16 KiB at the example size)
    # live in VMEM, the scalar result goes to SMEM. No grid scaffolding, no
    # double buffers, no padded output tile.
    # NOTE: this single-block design assumes both inputs fit scoped VMEM
    # (~32 MiB default on v6e/v7x, 16 MiB on v5e; v7x physical VMEM is only
    # 64 MiB). A large-N variant needs a gridded streaming design instead.
    out = pl.pallas_call(
        kernel,
        out_shape=jax.ShapeDtypeStruct((1, 1), jnp.float32),
        in_specs=[
            pl.BlockSpec(memory_space=pltpu.MemorySpace.VMEM),
            pl.BlockSpec(memory_space=pltpu.MemorySpace.VMEM),
        ],
        out_specs=pl.BlockSpec(memory_space=pltpu.MemorySpace.SMEM),
    )(pred2d, targ2d)
    return out[0, 0]


def _reference(predictions, targets):
    t = targets.astype(jnp.float32)
    p = predictions.astype(jnp.float32)
    mean = jnp.mean(t)
    std = jnp.std(t, ddof=1)
    w = jnp.exp(-jnp.abs(t - mean) / std)
    return jnp.mean(w * (p - t) ** 2)


if __name__ == "__main__":
    key = jax.random.PRNGKey(0)
    kp, kt = jax.random.split(key)
    # NCHW inputs, batch=2, channels=4, spatial=16x16 -> 2048 elements.
    predictions = jax.random.normal(kp, (2, 4, 16, 16), dtype=jnp.float32)
    targets = jax.random.normal(kt, (2, 4, 16, 16), dtype=jnp.float32)

    loss = jax.block_until_ready(weighted_mse_loss(predictions, targets))
    ref = jax.block_until_ready(_reference(predictions, targets))

    assert jnp.allclose(loss, ref, rtol=1e-5, atol=1e-6), (loss, ref)
    print("KERNEL_OK")
</pallas_src>

<mosaic_0001>
module attributes {stable_mosaic.version = 11 : i64} {
  func.func @_wmse_kernel(%arg0: memref<16x128xf32, #tpu.memory_space<vmem>>, %arg1: memref<16x128xf32, #tpu.memory_space<vmem>>, %arg2: memref<1x1xf32, #tpu.memory_space<smem>>) attributes {dimension_semantics = [], scalar_prefetch = 0 : i64, scratch_operands = 0 : i64, tpu.core_type = #tpu.core_type<tc>} {
    %c0 = arith.constant 0 : index
    %c0_0 = arith.constant 0 : index
    %0 = vector.load %arg1[%c0, %c0_0] : memref<16x128xf32, #tpu.memory_space<vmem>>, vector<16x128xf32>
    %c0_1 = arith.constant 0 : index
    %c0_2 = arith.constant 0 : index
    %1 = vector.load %arg0[%c0_1, %c0_2] : memref<16x128xf32, #tpu.memory_space<vmem>>, vector<16x128xf32>
    %2 = vector.shape_cast %0 : vector<16x128xf32> to vector<1x16x128xf32>
    %cst = arith.constant dense<0.000000e+00> : vector<1xf32>
    %3 = vector.multi_reduction <add>, %2, %cst [1, 2] : vector<1x16x128xf32> to vector<1xf32>
    %4 = vector.shape_cast %3 : vector<1xf32> to vector<1x1x1xf32>
    %5 = vector.extract %4[0, 0, 0] : f32 from vector<1x1x1xf32>
    %cst_3 = arith.constant 4.8828125E-4 : f32
    %6 = arith.mulf %5, %cst_3 : f32
    %7 = vector.broadcast %6 : f32 to vector<16x128xf32>
    %8 = arith.subf %0, %7 : vector<16x128xf32>
    %9 = arith.mulf %8, %8 : vector<16x128xf32>
    %10 = vector.shape_cast %9 : vector<16x128xf32> to vector<1x16x128xf32>
    %cst_4 = arith.constant dense<0.000000e+00> : vector<1xf32>
    %11 = vector.multi_reduction <add>, %10, %cst_4 [1, 2] : vector<1x16x128xf32> to vector<1xf32>
    %12 = vector.shape_cast %11 : vector<1xf32> to vector<1x1x1xf32>
    %13 = vector.extract %12[0, 0, 0] : f32 from vector<1x1x1xf32>
    %cst_5 = arith.constant 4.88519785E-4 : f32
    %14 = arith.mulf %13, %cst_5 : f32
    %15 = math.rsqrt %14 : f32
    %cst_6 = arith.constant 0.000000e+00 : f32
    %16 = arith.subf %cst_6, %15 : f32
    %17 = math.absf %8 : vector<16x128xf32>
    %18 = vector.broadcast %16 : f32 to vector<16x128xf32>
    %19 = arith.mulf %17, %18 : vector<16x128xf32>
    %20 = math.exp %19 : vector<16x128xf32>
    %21 = arith.subf %1, %0 : vector<16x128xf32>
    %22 = arith.mulf %20, %21 : vector<16x128xf32>
    %23 = arith.mulf %22, %21 : vector<16x128xf32>
    %24 = vector.shape_cast %23 : vector<16x128xf32> to vector<1x16x128xf32>
    %cst_7 = arith.constant dense<0.000000e+00> : vector<1xf32>
    %25 = vector.multi_reduction <add>, %24, %cst_7 [1, 2] : vector<1x16x128xf32> to vector<1xf32>
    %26 = vector.shape_cast %25 : vector<1xf32> to vector<1x1x1xf32>
    %27 = vector.extract %26[0, 0, 0] : f32 from vector<1x1x1xf32>
    %cst_8 = arith.constant 4.8828125E-4 : f32
    %28 = arith.mulf %27, %cst_8 : f32
    %c0_9 = arith.constant 0 : index
    %c0_10 = arith.constant 0 : index
    %29 = memref.load %arg2[%c0_9, %c0_10] : memref<1x1xf32, #tpu.memory_space<smem>>
    memref.store %28, %arg2[%c0_9, %c0_10] : memref<1x1xf32, #tpu.memory_space<smem>>
    return
  }
}

</mosaic_0001>

<llo_original>
// kernel: tpu_custom_call.1
$region0: #{tpu_custom_call.1}
  #allocation0 [shape = 'u32[]', space=smem, size = 0x4, offset = 0x4, fixed_abs, tag = 'smem constant byte address 0x4 - core index']
  #allocation1 [shape = 'u32[72,128]{1,0:T(1,128)}', space=vmem, size = 0x9000, scoped, tag = 'internal scratch']
  %s0 = inlined_call_operand.hbm [shape: f32[16,128], index: 0, kind: input, shape index: {}]
  %s1 = inlined_call_operand.hbm [shape: f32[16,128], index: 1, kind: input, shape index: {}]
  %s2 = inlined_call_operand.hbm [shape: f32[1,1], index: 2, kind: output, shape index: {}]
  %s3 = sld [smem:[#allocation0]]
  $region26: #{tpu_custom_call.1} parent=0
    _
  %s5 = ssub.s32 1, %s3
  %s6 = scalar_select 0, %s5, %s3
  $region1: #{tpu_custom_call.1} parent=0
    #allocation2 [shape = 'u8[8192]{0}', space=vmem, size = 0x2000, scoped, tag = 'input window, operand 0, single buffered']
    #allocation3 [shape = 's32[1]{0}', space=sflag, size = 0x4, scoped, tag = 'scoped memory for tpu_custom_call.1']
    #allocation4 [shape = 's32[1]{0}', space=sflag, size = 0x4, scoped, tag = 'scoped memory for tpu_custom_call.1']
    #allocation5 [shape = 'u8[8192]{0}', space=vmem, size = 0x2000, scoped, tag = 'input window, operand 1, single buffered']
    #allocation6 [shape = 's32[1]{0}', space=sflag, size = 0x4, scoped, tag = 'scoped memory for tpu_custom_call.1']
    #allocation7 [shape = 'u8[512]{0}', space=smem, size = 0x200, scoped, tag = 'output window, operand 0, single buffered']
    %7 = vsyncpa [#allocation3], 0
    %8 = vsyncpa [#allocation6], 0
    %9 = vsyncpa [#allocation4], 0
    // Predicated region
    $region2: #{tpu_custom_call.1} parent=1 // pred_check
      _
    $region3: #{tpu_custom_call.1} parent=1 // pred_check_branch
      %11 = sbr.rel (0) target = $region5
    $region4: #{tpu_custom_call.1} parent=1 // pred_region
      %13 = vsyncadd [#allocation3], 0
      %s14 = sshll.u32 %s0, 4
      %s15 = int_to_ptr.hbm [resolvable:$true] %s14
      %s16 = sshll.u32 [#allocation2], 4
      %s17 = int_to_ptr.vmem [resolvable:$true] %s16
      %22 = dma.hbm_to_vmem [thread:$0]  %s15, 256, %s17, [#allocation3], 128, 128, 8
    $region5: #{tpu_custom_call.1} parent=1 // pred_fallthru
      _
    // Predicated region
    $region6: #{tpu_custom_call.1} parent=1 // pred_check
      _
    $region7: #{tpu_custom_call.1} parent=1 // pred_check_branch
      %24 = sbr.rel (0) target = $region9
    $region8: #{tpu_custom_call.1} parent=1 // pred_region
      %26 = vsyncadd [#allocation6], 0
      %s27 = sshll.u32 %s1, 4
      %s28 = int_to_ptr.hbm [resolvable:$true] %s27
      %s29 = sshll.u32 [#allocation5], 4
      %s30 = int_to_ptr.vmem [resolvable:$true] %s29
      %35 = dma.hbm_to_vmem [thread:$0]  %s28, 256, %s30, [#allocation6], 128, 128, 8
    $region9: #{tpu_custom_call.1} parent=1 // pred_fallthru
      _
    // Predicated region
    $region10: #{tpu_custom_call.1} parent=1 // pred_check
      _
    $region11: #{tpu_custom_call.1} parent=1 // pred_check_branch
      %37 = sbr.rel (0) target = $region13
    $region12: #{tpu_custom_call.1} parent=1 // pred_region
      %39 = dma.done [#allocation3], 256
    $region13: #{tpu_custom_call.1} parent=1 // pred_fallthru
      _
    // Predicated region
    $region14: #{tpu_custom_call.1} parent=1 // pred_check
      _
    $region15: #{tpu_custom_call.1} parent=1 // pred_check_branch
      %41 = sbr.rel (0) target = $region17
    $region16: #{tpu_custom_call.1} parent=1 // pred_region
      %43 = dma.done [#allocation6], 256
    $region17: #{tpu_custom_call.1} parent=1 // pred_fallthru
      _
    %v44 = vld [vmem:[#allocation5] sm:$0xff]
    %v45 = vld [vmem:[#allocation5 + $0x8] sm:$0xff]
    %v46 = vld [vmem:[#allocation2] sm:$0xff]
    %v47 = vld [vmem:[#allocation2 + $0x8] sm:$0xff]
    %v48 = vadd.f32 %v44, %v45
    %49 = vadd.xlane.f32.xlu0 %v48
    %v50 = vpop.xlane.xlu0 %49
    %v51 = vrot.slane %v50, 4
    %v52 = vadd.f32 %v50, %v51
    %v53 = vrot.slane %v52, 2
    %v54 = vadd.f32 %v52, %v53
    %v55 = vrot.slane %v54, 1
    %v56 = vadd.f32 %v54, %v55
    %s57 = vtos %v56
    %s58 = smul.f32 %s57, 0.00048828125
    %v59 = vstv %s58
    %v60 = vsub.f32 %v44, %v59
    %v61 = vsub.f32 %v45, %v59
    %v62 = vmul.f32 %v60, %v60
    %v63 = vmul.f32 %v61, %v61
    %v64 = vadd.f32 %v62, %v63
    %65 = vadd.xlane.f32.xlu0 %v64
    %v66 = vpop.xlane.xlu0 %65
    %v67 = vrot.slane %v66, 4
    %v68 = vadd.f32 %v66, %v67
    %v69 = vrot.slane %v68, 2
    %v70 = vadd.f32 %v68, %v69
    %v71 = vrot.slane %v70, 1
    %v72 = vadd.f32 %v70, %v71
    %s73 = vtos %v72
    %s74 = smul.f32 %s73, 0.0004885198
    %v75 = vstv %s74
    %v76 = vrsqrt.pop %v75
    %v77 = vmul.f32 %v76, %v75
    %v78 = vmul.f32 %v77, %v76
    %v79 = vmul.f32 0.5, %v78
    %v80 = vsub.f32 1.5, %v79
    %v81 = vmul.f32 %v76, %v80
    %vm82 = vweird.f32 %v75
    %vm83 = vweird.f32 %v76
    %vm84 = vmor %vm82, %vm83
    %v85 = vsel %vm84, %v76, %v81
    %s86 = vtos %v85
    %s87 = ssub.f32 0.0, %s86
    %v88 = vand.u32 2147483647, %v60
    %v89 = vand.u32 2147483647, %v61
    %v90 = vstv %s87
    %v91 = vmul.f32 %v88, %v90
    %v92 = vmul.f32 %v89, %v90
    %v93 = vmul.f32 %v91, 1.442695
    %v94 = vpow.pop %v93
    %v95 = vmul.f32 %v92, 1.442695
    %v96 = vpow.pop %v95
    %v97 = vsub.f32 %v46, %v44
    %v98 = vsub.f32 %v47, %v45
    %v99 = vmul.f32 %v94, %v97
    %v100 = vmul.f32 %v96, %v98
    %v101 = vmul.f32 %v99, %v97
    %v102 = vmul.f32 %v100, %v98
    %v103 = vadd.f32 %v101, %v102
    %104 = vadd.xlane.f32.xlu0 %v103
    %v105 = vpop.xlane.xlu0 %104
    %v106 = vrot.slane %v105, 4
    %v107 = vadd.f32 %v105, %v106
    %v108 = vrot.slane %v107, 2
    %v109 = vadd.f32 %v107, %v108
    %v110 = vrot.slane %v109, 1
    %v111 = vadd.f32 %v109, %v110
    %s112 = vtos %v111
    %s113 = smul.f32 %s112, 0.00048828125
    %s114 = scalar_lea.smem [#allocation7], 0
    %115 = sst [smem:[%s114]] %s113
    // Predicated region
    $region18: #{tpu_custom_call.1} parent=1 // pred_check
      _
    $region19: #{tpu_custom_call.1} parent=1 // pred_check_branch
      %117 = sbr.rel (0) target = $region21
    $region20: #{tpu_custom_call.1} parent=1 // pred_region
      %119 = vsyncadd [#allocation4], 0
      %s121 = sshll.u32 %s2, 4
      %s122 = int_to_ptr.hbm [resolvable:$true] %s121
      %124 = dma.smem_to_hbm [#allocation7], 16, %s122, [#allocation4]
    $region21: #{tpu_custom_call.1} parent=1 // pred_fallthru
      _
    // Predicated region
    $region22: #{tpu_custom_call.1} parent=1 // pred_check
      _
    $region23: #{tpu_custom_call.1} parent=1 // pred_check_branch
      %126 = sbr.rel (0) target = $region25
    $region24: #{tpu_custom_call.1} parent=1 // pred_region
      %128 = dma.done [#allocation4], 16
    $region25: #{tpu_custom_call.1} parent=1 // pred_fallthru
      _
    %129 = sfence
    %130 = vsyncpa [#allocation3], 1
    %131 = vsyncpa [#allocation6], 1
    %132 = vsyncpa [#allocation4], 1

</llo_original>
